<compile_context>
chip_gen: v5e
topology: v5e:2x2
jax: 0.10.0
libtpu: 0.0.40
codegen_flags: <defaults>
</compile_context>

<pallas_src>
import numpy as np
import jax
import jax.numpy as jnp
from jax.experimental import pallas as pl
from jax.experimental.pallas import tpu as pltpu

_B = 8  # samples per grid program (batch-minor packing; multiple of the 8-sublane tile)


# ----------------------------------------------------------------------------
# Single fused Pallas kernel:
#   conv1+ReLU+pool1 -> conv2+ReLU+pool2 -> fc1+ReLU -> fc2+ReLU -> fc3
# ----------------------------------------------------------------------------
def _lenet_fused_kernel(ximg_ref, w1b_ref, b1t_ref, w2b_ref, b2t_ref,
                        g1_ref, bf1_ref, wf2_ref, bf2_ref, wf3_ref, bf3_ref,
                        o_ref):
    f32 = jnp.float32
    B = o_ref.shape[0]            # samples handled by this program (== _B == 8)
    mm = w1b_ref.dtype            # matmul operand dtype (f32 by default, bf16 optional)

    # ximg block: (20, B, 20) = ((parity,j), n, wi); padded image row = 2*j + parity.
    # Flatten to rows (parity*10+j)*B + n once; B == 8 keeps every slice sublane-aligned.
    X = ximg_ref[...].reshape(20 * B, 20)

    # ---- conv1 (5x5, pad 2) + bias + ReLU + maxpool 2x2 : two banded matmuls --------
    # For pool sub-row dh, LHS row (ho, n) gathers padded rows 2*ho + dh + kh, which are
    # contiguous 8*B-row slices of X thanks to the even/odd row grouping.
    z = []
    for dh in range(2):
        parts = []
        for kh in range(5):
            s = dh + kh
            m, par = s // 2, s % 2
            parts.append(X[(par * 10 + m) * B:(par * 10 + m + 8) * B, :])   # (8B, 20)
        lhs1 = jnp.concatenate(parts, axis=1)                               # (8B, 100)
        z.append(jnp.dot(lhs1.astype(mm), w1b_ref[...],
                         preferred_element_type=f32))    # (8B, 96) lanes = (dw, wo, c)
    # pool over (dh, dw) is a max over two lane blocks of each of the two matmuls;
    # bias+ReLU after the max is exact (uniform bias, monotone max/ReLU).
    a1 = jnp.maximum(jnp.maximum(z[0][:, 0:48], z[0][:, 48:96]),
                     jnp.maximum(z[1][:, 0:48], z[1][:, 48:96]))
    a1 = jnp.maximum(a1 + b1t_ref[...], 0.0)             # (8B, 48) rows=(ho,n) lanes=(wo,c)

    # ---- conv2 (5x5, valid) + bias + ReLU as ONE K=240 (->256) matmul ---------------
    # Row slices a1[kh*B:(kh+4)*B] are sublane-aligned; lanes pack (kh, wo, c).
    lhs2 = jnp.concatenate([a1[kh * B:(kh + 4) * B, :] for kh in range(5)],
                           axis=1)                       # (4B, 240)
    c2 = jnp.dot(lhs2.astype(mm), w2b_ref[...],
                 preferred_element_type=f32)             # (4B, 64) rows=(h2,n) lanes=(w2,co)
    c2 = jnp.maximum(c2 + b2t_ref[...], 0.0)

    # ---- maxpool 2x2 + NCHW flatten folded into fc1 (block maxes, no per-sample ops) -
    ph0 = jnp.maximum(c2[0 * B:1 * B, :], c2[1 * B:2 * B, :])   # qh = 0, (B, 64)
    ph1 = jnp.maximum(c2[2 * B:3 * B, :], c2[3 * B:4 * B, :])   # qh = 1, (B, 64)
    feats = jnp.concatenate(
        [jnp.maximum(ph0[:, 0:16], ph0[:, 16:32]),              # (qh,qw) = (0,0)
         jnp.maximum(ph0[:, 32:48], ph0[:, 48:64]),             # (0,1)
         jnp.maximum(ph1[:, 0:16], ph1[:, 16:32]),              # (1,0)
         jnp.maximum(ph1[:, 32:48], ph1[:, 48:64])], axis=1)    # (1,1)  -> (B, 64)

    # ---- fc1 + ReLU, fc2 + ReLU, fc3 (lane-padded to 128 -> one unmasked store) -----
    y1 = jnp.maximum(jnp.dot(feats.astype(mm), g1_ref[...],
                             preferred_element_type=f32) + bf1_ref[...], 0.0)
    y2 = jnp.maximum(jnp.dot(y1.astype(mm), wf2_ref[...],
                             preferred_element_type=f32) + bf2_ref[...], 0.0)
    y3 = jnp.dot(y2.astype(mm), wf3_ref[...],
                 preferred_element_type=f32) + bf3_ref[...]
    o_ref[...] = y3.astype(o_ref.dtype)                         # (B, 128)


# ----------------------------------------------------------------------------
# Static weight repacking (XLA glue on parameters only, all tiny)
# ----------------------------------------------------------------------------
def _pack_params(p, mm_dtype):
    f32 = jnp.float32

    # conv1 band: rows (kh, wi), cols (dw, wo, c); value = w1[c, kh, wi - (2*wo + dw)].
    r, c_ = np.arange(100), np.arange(96)
    KH, WI = r[:, None] // 20, r[:, None] % 20
    DW, REM = c_[None, :] // 48, c_[None, :] % 48
    WO, C = REM // 6, REM % 6
    KW = WI - (2 * WO + DW)
    w1flat = p["conv1_w"][:, 0]                                           # (6, 5, 5)
    w1b = jnp.where(jnp.asarray((KW >= 0) & (KW < 5)),
                    w1flat[C, KH, np.clip(KW, 0, 4)], 0.0).astype(mm_dtype)  # (100, 96)
    b1t = jnp.tile(p["conv1_b"], 8).reshape(1, 48).astype(f32)            # lanes (wo, c)

    # conv2 band: rows (kh, wo, c), cols (w2, co); value = w2[co, c, kh, wo - w2].
    r, c_ = np.arange(240), np.arange(64)
    KH, REM = r[:, None] // 48, r[:, None] % 48
    WO, C = REM // 6, REM % 6
    W2, CO = c_[None, :] // 16, c_[None, :] % 16
    KW = WO - W2
    w2b = jnp.where(jnp.asarray((KW >= 0) & (KW < 5)),
                    p["conv2_w"][CO, C, KH, np.clip(KW, 0, 4)], 0.0).astype(mm_dtype)  # (240, 64)
    b2t = jnp.tile(p["conv2_b"], 4).reshape(1, 64).astype(f32)            # lanes (w2, co)

    # fc1 rows reordered to match the kernel's (qh, qw, co) feature lane order.
    g1 = jnp.transpose(p["fc1_w"].reshape(16, 2, 2, 32), (1, 2, 0, 3)).reshape(64, 32)
    g1 = g1.astype(mm_dtype)
    bf1 = p["fc1_b"].reshape(1, 32).astype(f32)
    wf2 = p["fc2_w"].astype(mm_dtype)
    bf2 = p["fc2_b"].reshape(1, 16).astype(f32)
    wf3 = jnp.pad(p["fc3_w"], ((0, 0), (0, 118))).astype(mm_dtype)        # (16, 128)
    bf3 = jnp.pad(p["fc3_b"], (0, 118)).reshape(1, 128).astype(f32)
    return (w1b, b1t, w2b, b2t, g1, bf1, wf2, bf2, wf3, bf3)


# ----------------------------------------------------------------------------
# Forward wrapper (the module's `_sequence` fold)
# ----------------------------------------------------------------------------
def cnn_aaf_forward(x, p, *, matmul_dtype=jnp.float32):
    """x: (N, 1, 16, 16) NCHW  ->  logits (N, 10)."""
    N = x.shape[0]
    assert x.shape[1:] == (1, 16, 16), x.shape
    assert _B % 8 == 0
    f32 = jnp.float32
    B = _B
    npad = max(B, -(-N // B) * B)
    grid = (npad // B,)

    # XLA glue touches ONLY the raw input: pad (spatial 2 + batch to B), reorder rows
    # even-then-odd, transpose to ((parity,j), n, wi) so every kernel slice is a
    # contiguous batch-minor row block.  ~1.6 KB/sample of HBM traffic.
    xp = jnp.pad(x.astype(matmul_dtype)[:, 0],
                 ((0, npad - N), (2, 2), (2, 2)))                 # (npad, 20, 20)
    order = np.concatenate([np.arange(0, 20, 2), np.arange(1, 20, 2)])
    ximg = jnp.transpose(xp[:, order, :], (1, 0, 2))              # (20, npad, 20)

    weights = _pack_params(p, matmul_dtype)

    in_specs = [pl.BlockSpec((20, B, 20), lambda i: (0, i, 0))]
    in_specs += [pl.BlockSpec(w.shape, lambda i: (0, 0)) for w in weights]
    out_specs = pl.BlockSpec((B, 128), lambda i: (i, 0))

    flops = 2 * npad * (2 * 8 * 100 * 96 + 4 * 240 * 64 + 64 * 32 + 32 * 16 + 16 * 128)
    bytes_accessed = (int(ximg.size) * ximg.dtype.itemsize
                      + sum(int(w.size) * w.dtype.itemsize for w in weights)
                      + npad * 128 * 4)
    cost = pl.CostEstimate(flops=int(flops), transcendentals=0,
                           bytes_accessed=int(bytes_accessed))

    out = pl.pallas_call(
        _lenet_fused_kernel,
        out_shape=jax.ShapeDtypeStruct((npad, 128), f32),
        grid=grid,
        in_specs=in_specs,
        out_specs=out_specs,
        compiler_params=pltpu.CompilerParams(dimension_semantics=("parallel",)),
        cost_estimate=cost,
    )(ximg, *weights)
    return out[:N, :10]


# ----------------------------------------------------------------------------
# Pure-JAX reference for correctness checking.
# ----------------------------------------------------------------------------
def ref_forward(x, p):
    dn = ("NCHW", "OIHW", "NCHW")
    y = jax.lax.conv_general_dilated(x, p["conv1_w"], (1, 1), ((2, 2), (2, 2)),
                                     dimension_numbers=dn)
    y = jax.nn.relu(y + p["conv1_b"][None, :, None, None])
    y = jax.lax.reduce_window(y, -jnp.inf, jax.lax.max, (1, 1, 2, 2), (1, 1, 2, 2), "VALID")
    y = jax.lax.conv_general_dilated(y, p["conv2_w"], (1, 1), "VALID",
                                     dimension_numbers=dn)
    y = jax.nn.relu(y + p["conv2_b"][None, :, None, None])
    y = jax.lax.reduce_window(y, -jnp.inf, jax.lax.max, (1, 1, 2, 2), (1, 1, 2, 2), "VALID")
    y = y.reshape(y.shape[0], -1)
    y = jax.nn.relu(y @ p["fc1_w"] + p["fc1_b"])
    y = jax.nn.relu(y @ p["fc2_w"] + p["fc2_b"])
    y = y @ p["fc3_w"] + p["fc3_b"]
    return y


def init_params(key):
    ks = jax.random.split(key, 10)
    f32 = jnp.float32
    return {
        "conv1_w": 0.1 * jax.random.normal(ks[0], (6, 1, 5, 5), f32),
        "conv1_b": 0.1 * jax.random.normal(ks[1], (6,), f32),
        "conv2_w": 0.1 * jax.random.normal(ks[2], (16, 6, 5, 5), f32),
        "conv2_b": 0.1 * jax.random.normal(ks[3], (16,), f32),
        "fc1_w": 0.1 * jax.random.normal(ks[4], (64, 32), f32),
        "fc1_b": 0.1 * jax.random.normal(ks[5], (32,), f32),
        "fc2_w": 0.1 * jax.random.normal(ks[6], (32, 16), f32),
        "fc2_b": 0.1 * jax.random.normal(ks[7], (16,), f32),
        "fc3_w": 0.1 * jax.random.normal(ks[8], (16, 10), f32),
        "fc3_b": 0.1 * jax.random.normal(ks[9], (10,), f32),
    }


if __name__ == "__main__":
    key = jax.random.PRNGKey(0)
    kx, kp = jax.random.split(key)
    x = jax.random.normal(kx, (2, 1, 16, 16), jnp.float32)   # NCHW: batch=2
    params = init_params(kp)

    out = jax.block_until_ready(jax.jit(cnn_aaf_forward)(x, params))
    ref = jax.block_until_ready(jax.jit(ref_forward)(x, params))

    assert out.shape == (2, 10), out.shape
    np.testing.assert_allclose(np.asarray(out), np.asarray(ref), rtol=1e-4, atol=1e-4)

    print("KERNEL_OK")
</pallas_src>

<mosaic_0001>
module attributes {stable_mosaic.version = 11 : i64} {
  func.func @_lenet_fused_kernel(%arg0: i32, %arg1: memref<20x8x20xf32, #tpu.memory_space<vmem>>, %arg2: memref<100x96xf32, #tpu.memory_space<vmem>>, %arg3: memref<1x48xf32, #tpu.memory_space<vmem>>, %arg4: memref<240x64xf32, #tpu.memory_space<vmem>>, %arg5: memref<1x64xf32, #tpu.memory_space<vmem>>, %arg6: memref<64x32xf32, #tpu.memory_space<vmem>>, %arg7: memref<1x32xf32, #tpu.memory_space<vmem>>, %arg8: memref<32x16xf32, #tpu.memory_space<vmem>>, %arg9: memref<1x16xf32, #tpu.memory_space<vmem>>, %arg10: memref<16x128xf32, #tpu.memory_space<vmem>>, %arg11: memref<1x128xf32, #tpu.memory_space<vmem>>, %arg12: memref<8x128xf32, #tpu.memory_space<vmem>>) attributes {dimension_semantics = [#tpu.dimension_semantics<parallel>], iteration_bounds = array<i64: 1>, scalar_prefetch = 0 : i64, scratch_operands = 0 : i64, tpu.core_type = #tpu.core_type<tc>, window_params = [{transform_indices = @transform_0, window_bounds = array<i64: 20, 8, 20>}, {pipeline_mode = #tpu.pipeline_mode<synchronous>, transform_indices = @transform_1, window_bounds = array<i64: 100, 96>}, {pipeline_mode = #tpu.pipeline_mode<synchronous>, transform_indices = @transform_2, window_bounds = array<i64: 1, 48>}, {pipeline_mode = #tpu.pipeline_mode<synchronous>, transform_indices = @transform_3, window_bounds = array<i64: 240, 64>}, {pipeline_mode = #tpu.pipeline_mode<synchronous>, transform_indices = @transform_4, window_bounds = array<i64: 1, 64>}, {pipeline_mode = #tpu.pipeline_mode<synchronous>, transform_indices = @transform_5, window_bounds = array<i64: 64, 32>}, {pipeline_mode = #tpu.pipeline_mode<synchronous>, transform_indices = @transform_6, window_bounds = array<i64: 1, 32>}, {pipeline_mode = #tpu.pipeline_mode<synchronous>, transform_indices = @transform_7, window_bounds = array<i64: 32, 16>}, {pipeline_mode = #tpu.pipeline_mode<synchronous>, transform_indices = @transform_8, window_bounds = array<i64: 1, 16>}, {pipeline_mode = #tpu.pipeline_mode<synchronous>, transform_indices = @transform_9, window_bounds = array<i64: 16, 128>}, {pipeline_mode = #tpu.pipeline_mode<synchronous>, transform_indices = @transform_10, window_bounds = array<i64: 1, 128>}, {transform_indices = @transform_11, window_bounds = array<i64: 8, 128>}]} {
    %c0 = arith.constant 0 : index
    %c0_0 = arith.constant 0 : index
    %c0_1 = arith.constant 0 : index
    %0 = vector.load %arg1[%c0, %c0_0, %c0_1] : memref<20x8x20xf32, #tpu.memory_space<vmem>>, vector<20x8x20xf32>
    %1 = vector.shape_cast %0 : vector<20x8x20xf32> to vector<160x20xf32>
    %2 = vector.extract_strided_slice %1 {offsets = [0, 0], sizes = [64, 20], strides = [1, 1]} : vector<160x20xf32> to vector<64x20xf32>
    %3 = vector.extract_strided_slice %1 {offsets = [80, 0], sizes = [64, 20], strides = [1, 1]} : vector<160x20xf32> to vector<64x20xf32>
    %4 = vector.extract_strided_slice %1 {offsets = [8, 0], sizes = [64, 20], strides = [1, 1]} : vector<160x20xf32> to vector<64x20xf32>
    %5 = vector.extract_strided_slice %1 {offsets = [88, 0], sizes = [64, 20], strides = [1, 1]} : vector<160x20xf32> to vector<64x20xf32>
    %6 = vector.extract_strided_slice %1 {offsets = [16, 0], sizes = [64, 20], strides = [1, 1]} : vector<160x20xf32> to vector<64x20xf32>
    %7 = tpu.concatenate %2, %3, %4, %5, %6 in 1 : vector<64x20xf32>, vector<64x20xf32>, vector<64x20xf32>, vector<64x20xf32>, vector<64x20xf32> -> vector<64x100xf32>
    %c0_2 = arith.constant 0 : index
    %c0_3 = arith.constant 0 : index
    %8 = vector.load %arg2[%c0_2, %c0_3] : memref<100x96xf32, #tpu.memory_space<vmem>>, vector<100x96xf32>
    %cst = arith.constant dense<0.000000e+00> : vector<64x96xf32>
    %9 = tpu.matmul %7, %8, %cst {dimension_numbers = #tpu.dot_dimension_numbers<[1], [0], [0], [1], [0, 0, 1, 1], [], []>} : vector<64x100xf32>, vector<100x96xf32>, vector<64x96xf32> -> vector<64x96xf32>
    %10 = vector.extract_strided_slice %1 {offsets = [80, 0], sizes = [64, 20], strides = [1, 1]} : vector<160x20xf32> to vector<64x20xf32>
    %11 = vector.extract_strided_slice %1 {offsets = [8, 0], sizes = [64, 20], strides = [1, 1]} : vector<160x20xf32> to vector<64x20xf32>
    %12 = vector.extract_strided_slice %1 {offsets = [88, 0], sizes = [64, 20], strides = [1, 1]} : vector<160x20xf32> to vector<64x20xf32>
    %13 = vector.extract_strided_slice %1 {offsets = [16, 0], sizes = [64, 20], strides = [1, 1]} : vector<160x20xf32> to vector<64x20xf32>
    %14 = vector.extract_strided_slice %1 {offsets = [96, 0], sizes = [64, 20], strides = [1, 1]} : vector<160x20xf32> to vector<64x20xf32>
    %15 = tpu.concatenate %10, %11, %12, %13, %14 in 1 : vector<64x20xf32>, vector<64x20xf32>, vector<64x20xf32>, vector<64x20xf32>, vector<64x20xf32> -> vector<64x100xf32>
    %c0_4 = arith.constant 0 : index
    %c0_5 = arith.constant 0 : index
    %16 = vector.load %arg2[%c0_4, %c0_5] : memref<100x96xf32, #tpu.memory_space<vmem>>, vector<100x96xf32>
    %cst_6 = arith.constant dense<0.000000e+00> : vector<64x96xf32>
    %17 = tpu.matmul %15, %16, %cst_6 {dimension_numbers = #tpu.dot_dimension_numbers<[1], [0], [0], [1], [0, 0, 1, 1], [], []>} : vector<64x100xf32>, vector<100x96xf32>, vector<64x96xf32> -> vector<64x96xf32>
    %18 = vector.extract_strided_slice %9 {offsets = [0, 0], sizes = [64, 48], strides = [1, 1]} : vector<64x96xf32> to vector<64x48xf32>
    %19 = vector.extract_strided_slice %9 {offsets = [0, 48], sizes = [64, 48], strides = [1, 1]} : vector<64x96xf32> to vector<64x48xf32>
    %20 = arith.maximumf %18, %19 : vector<64x48xf32>
    %21 = vector.extract_strided_slice %17 {offsets = [0, 0], sizes = [64, 48], strides = [1, 1]} : vector<64x96xf32> to vector<64x48xf32>
    %22 = vector.extract_strided_slice %17 {offsets = [0, 48], sizes = [64, 48], strides = [1, 1]} : vector<64x96xf32> to vector<64x48xf32>
    %23 = arith.maximumf %21, %22 : vector<64x48xf32>
    %24 = arith.maximumf %20, %23 : vector<64x48xf32>
    %c0_7 = arith.constant 0 : index
    %c0_8 = arith.constant 0 : index
    %25 = vector.load %arg3[%c0_7, %c0_8] : memref<1x48xf32, #tpu.memory_space<vmem>>, vector<1x48xf32>
    %26 = vector.broadcast %25 : vector<1x48xf32> to vector<64x48xf32>
    %27 = arith.addf %24, %26 : vector<64x48xf32>
    %cst_9 = arith.constant 0.000000e+00 : f32
    %28 = vector.broadcast %cst_9 : f32 to vector<64x48xf32>
    %29 = arith.maximumf %27, %28 : vector<64x48xf32>
    %30 = vector.extract_strided_slice %29 {offsets = [0, 0], sizes = [32, 48], strides = [1, 1]} : vector<64x48xf32> to vector<32x48xf32>
    %31 = vector.extract_strided_slice %29 {offsets = [8, 0], sizes = [32, 48], strides = [1, 1]} : vector<64x48xf32> to vector<32x48xf32>
    %32 = vector.extract_strided_slice %29 {offsets = [16, 0], sizes = [32, 48], strides = [1, 1]} : vector<64x48xf32> to vector<32x48xf32>
    %33 = vector.extract_strided_slice %29 {offsets = [24, 0], sizes = [32, 48], strides = [1, 1]} : vector<64x48xf32> to vector<32x48xf32>
    %34 = vector.extract_strided_slice %29 {offsets = [32, 0], sizes = [32, 48], strides = [1, 1]} : vector<64x48xf32> to vector<32x48xf32>
    %35 = tpu.concatenate %30, %31, %32, %33, %34 in 1 : vector<32x48xf32>, vector<32x48xf32>, vector<32x48xf32>, vector<32x48xf32>, vector<32x48xf32> -> vector<32x240xf32>
    %c0_10 = arith.constant 0 : index
    %c0_11 = arith.constant 0 : index
    %36 = vector.load %arg4[%c0_10, %c0_11] : memref<240x64xf32, #tpu.memory_space<vmem>>, vector<240x64xf32>
    %cst_12 = arith.constant dense<0.000000e+00> : vector<32x64xf32>
    %37 = tpu.matmul %35, %36, %cst_12 {dimension_numbers = #tpu.dot_dimension_numbers<[1], [0], [0], [1], [0, 0, 1, 1], [], []>} : vector<32x240xf32>, vector<240x64xf32>, vector<32x64xf32> -> vector<32x64xf32>
    %c0_13 = arith.constant 0 : index
    %c0_14 = arith.constant 0 : index
    %38 = vector.load %arg5[%c0_13, %c0_14] : memref<1x64xf32, #tpu.memory_space<vmem>>, vector<1x64xf32>
    %39 = vector.broadcast %38 : vector<1x64xf32> to vector<32x64xf32>
    %40 = arith.addf %37, %39 : vector<32x64xf32>
    %cst_15 = arith.constant 0.000000e+00 : f32
    %41 = vector.broadcast %cst_15 : f32 to vector<32x64xf32>
    %42 = arith.maximumf %40, %41 : vector<32x64xf32>
    %43 = vector.extract_strided_slice %42 {offsets = [0, 0], sizes = [8, 64], strides = [1, 1]} : vector<32x64xf32> to vector<8x64xf32>
    %44 = vector.extract_strided_slice %42 {offsets = [8, 0], sizes = [8, 64], strides = [1, 1]} : vector<32x64xf32> to vector<8x64xf32>
    %45 = arith.maximumf %43, %44 : vector<8x64xf32>
    %46 = vector.extract_strided_slice %42 {offsets = [16, 0], sizes = [8, 64], strides = [1, 1]} : vector<32x64xf32> to vector<8x64xf32>
    %47 = vector.extract_strided_slice %42 {offsets = [24, 0], sizes = [8, 64], strides = [1, 1]} : vector<32x64xf32> to vector<8x64xf32>
    %48 = arith.maximumf %46, %47 : vector<8x64xf32>
    %49 = vector.extract_strided_slice %45 {offsets = [0, 0], sizes = [8, 16], strides = [1, 1]} : vector<8x64xf32> to vector<8x16xf32>
    %50 = vector.extract_strided_slice %45 {offsets = [0, 16], sizes = [8, 16], strides = [1, 1]} : vector<8x64xf32> to vector<8x16xf32>
    %51 = arith.maximumf %49, %50 : vector<8x16xf32>
    %52 = vector.extract_strided_slice %45 {offsets = [0, 32], sizes = [8, 16], strides = [1, 1]} : vector<8x64xf32> to vector<8x16xf32>
    %53 = vector.extract_strided_slice %45 {offsets = [0, 48], sizes = [8, 16], strides = [1, 1]} : vector<8x64xf32> to vector<8x16xf32>
    %54 = arith.maximumf %52, %53 : vector<8x16xf32>
    %55 = vector.extract_strided_slice %48 {offsets = [0, 0], sizes = [8, 16], strides = [1, 1]} : vector<8x64xf32> to vector<8x16xf32>
    %56 = vector.extract_strided_slice %48 {offsets = [0, 16], sizes = [8, 16], strides = [1, 1]} : vector<8x64xf32> to vector<8x16xf32>
    %57 = arith.maximumf %55, %56 : vector<8x16xf32>
    %58 = vector.extract_strided_slice %48 {offsets = [0, 32], sizes = [8, 16], strides = [1, 1]} : vector<8x64xf32> to vector<8x16xf32>
    %59 = vector.extract_strided_slice %48 {offsets = [0, 48], sizes = [8, 16], strides = [1, 1]} : vector<8x64xf32> to vector<8x16xf32>
    %60 = arith.maximumf %58, %59 : vector<8x16xf32>
    %61 = tpu.concatenate %51, %54, %57, %60 in 1 : vector<8x16xf32>, vector<8x16xf32>, vector<8x16xf32>, vector<8x16xf32> -> vector<8x64xf32>
    %c0_16 = arith.constant 0 : index
    %c0_17 = arith.constant 0 : index
    %62 = vector.load %arg6[%c0_16, %c0_17] : memref<64x32xf32, #tpu.memory_space<vmem>>, vector<64x32xf32>
    %cst_18 = arith.constant dense<0.000000e+00> : vector<8x32xf32>
    %63 = tpu.matmul %61, %62, %cst_18 {dimension_numbers = #tpu.dot_dimension_numbers<[1], [0], [0], [1], [0, 0, 1, 1], [], []>} : vector<8x64xf32>, vector<64x32xf32>, vector<8x32xf32> -> vector<8x32xf32>
    %c0_19 = arith.constant 0 : index
    %c0_20 = arith.constant 0 : index
    %64 = vector.load %arg7[%c0_19, %c0_20] : memref<1x32xf32, #tpu.memory_space<vmem>>, vector<1x32xf32>
    %65 = vector.broadcast %64 : vector<1x32xf32> to vector<8x32xf32>
    %66 = arith.addf %63, %65 : vector<8x32xf32>
    %cst_21 = arith.constant 0.000000e+00 : f32
    %67 = vector.broadcast %cst_21 : f32 to vector<8x32xf32>
    %68 = arith.maximumf %66, %67 : vector<8x32xf32>
    %c0_22 = arith.constant 0 : index
    %c0_23 = arith.constant 0 : index
    %69 = vector.load %arg8[%c0_22, %c0_23] : memref<32x16xf32, #tpu.memory_space<vmem>>, vector<32x16xf32>
    %cst_24 = arith.constant dense<0.000000e+00> : vector<8x16xf32>
    %70 = tpu.matmul %68, %69, %cst_24 {dimension_numbers = #tpu.dot_dimension_numbers<[1], [0], [0], [1], [0, 0, 1, 1], [], []>} : vector<8x32xf32>, vector<32x16xf32>, vector<8x16xf32> -> vector<8x16xf32>
    %c0_25 = arith.constant 0 : index
    %c0_26 = arith.constant 0 : index
    %71 = vector.load %arg9[%c0_25, %c0_26] : memref<1x16xf32, #tpu.memory_space<vmem>>, vector<1x16xf32>
    %72 = vector.broadcast %71 : vector<1x16xf32> to vector<8x16xf32>
    %73 = arith.addf %70, %72 : vector<8x16xf32>
    %cst_27 = arith.constant 0.000000e+00 : f32
    %74 = vector.broadcast %cst_27 : f32 to vector<8x16xf32>
    %75 = arith.maximumf %73, %74 : vector<8x16xf32>
    %c0_28 = arith.constant 0 : index
    %c0_29 = arith.constant 0 : index
    %76 = vector.load %arg10[%c0_28, %c0_29] : memref<16x128xf32, #tpu.memory_space<vmem>>, vector<16x128xf32>
    %cst_30 = arith.constant dense<0.000000e+00> : vector<8x128xf32>
    %77 = tpu.matmul %75, %76, %cst_30 {dimension_numbers = #tpu.dot_dimension_numbers<[1], [0], [0], [1], [0, 0, 1, 1], [], []>} : vector<8x16xf32>, vector<16x128xf32>, vector<8x128xf32> -> vector<8x128xf32>
    %c0_31 = arith.constant 0 : index
    %c0_32 = arith.constant 0 : index
    %78 = vector.load %arg11[%c0_31, %c0_32] : memref<1x128xf32, #tpu.memory_space<vmem>>, vector<1x128xf32>
    %79 = vector.broadcast %78 : vector<1x128xf32> to vector<8x128xf32>
    %80 = arith.addf %77, %79 : vector<8x128xf32>
    %c0_33 = arith.constant 0 : index
    %c0_34 = arith.constant 0 : index
    %81 = vector.load %arg12[%c0_33, %c0_34] : memref<8x128xf32, #tpu.memory_space<vmem>>, vector<8x128xf32>
    tpu.vector_store %arg12[%c0_33, %c0_34], %80 {strides = array<i32>} : memref<8x128xf32, #tpu.memory_space<vmem>>, vector<8x128xf32>,
    return
  }
  func.func @transform_0(%arg0: i32) -> (i32, i32, i32) {
    %c0_i32 = arith.constant 0 : i32
    %c0_i32_0 = arith.constant 0 : i32
    %c0_i32_1 = arith.constant 0 : i32
    return %c0_i32, %arg0, %c0_i32_0 : i32, i32, i32
  }
  func.func @transform_1(%arg0: i32) -> (i32, i32) {
    %c0_i32 = arith.constant 0 : i32
    %c0_i32_0 = arith.constant 0 : i32
    %c0_i32_1 = arith.constant 0 : i32
    return %c0_i32, %c0_i32_0 : i32, i32
  }
  func.func @transform_2(%arg0: i32) -> (i32, i32) {
    %c0_i32 = arith.constant 0 : i32
    %c0_i32_0 = arith.constant 0 : i32
    %c0_i32_1 = arith.constant 0 : i32
    return %c0_i32, %c0_i32_0 : i32, i32
  }
  func.func @transform_3(%arg0: i32) -> (i32, i32) {
    %c0_i32 = arith.constant 0 : i32
    %c0_i32_0 = arith.constant 0 : i32
    %c0_i32_1 = arith.constant 0 : i32
    return %c0_i32, %c0_i32_0 : i32, i32
  }
  func.func @transform_4(%arg0: i32) -> (i32, i32) {
    %c0_i32 = arith.constant 0 : i32
    %c0_i32_0 = arith.constant 0 : i32
    %c0_i32_1 = arith.constant 0 : i32
    return %c0_i32, %c0_i32_0 : i32, i32
  }
  func.func @transform_5(%arg0: i32) -> (i32, i32) {
    %c0_i32 = arith.constant 0 : i32
    %c0_i32_0 = arith.constant 0 : i32
    %c0_i32_1 = arith.constant 0 : i32
    return %c0_i32, %c0_i32_0 : i32, i32
  }
  func.func @transform_6(%arg0: i32) -> (i32, i32) {
    %c0_i32 = arith.constant 0 : i32
    %c0_i32_0 = arith.constant 0 : i32
    %c0_i32_1 = arith.constant 0 : i32
    return %c0_i32, %c0_i32_0 : i32, i32
  }
  func.func @transform_7(%arg0: i32) -> (i32, i32) {
    %c0_i32 = arith.constant 0 : i32
    %c0_i32_0 = arith.constant 0 : i32
    %c0_i32_1 = arith.constant 0 : i32
    return %c0_i32, %c0_i32_0 : i32, i32
  }
  func.func @transform_8(%arg0: i32) -> (i32, i32) {
    %c0_i32 = arith.constant 0 : i32
    %c0_i32_0 = arith.constant 0 : i32
    %c0_i32_1 = arith.constant 0 : i32
    return %c0_i32, %c0_i32_0 : i32, i32
  }
  func.func @transform_9(%arg0: i32) -> (i32, i32) {
    %c0_i32 = arith.constant 0 : i32
    %c0_i32_0 = arith.constant 0 : i32
    %c0_i32_1 = arith.constant 0 : i32
    return %c0_i32, %c0_i32_0 : i32, i32
  }
  func.func @transform_10(%arg0: i32) -> (i32, i32) {
    %c0_i32 = arith.constant 0 : i32
    %c0_i32_0 = arith.constant 0 : i32
    %c0_i32_1 = arith.constant 0 : i32
    return %c0_i32, %c0_i32_0 : i32, i32
  }
  func.func @transform_11(%arg0: i32) -> (i32, i32) {
    %c0_i32 = arith.constant 0 : i32
    %c0_i32_0 = arith.constant 0 : i32
    return %arg0, %c0_i32 : i32, i32
  }
}

</mosaic_0001>

<llo_original>
// kernel: tile.13
$region0: #{tile.13}
  #allocation0 [shape = 's32[1]{0}', space=sflag, size = 0x4, scoped, tag = 'scoped memory for tile.13']
  %s0 = inlined_call_operand.vmem [shape: f32[6], index: 0, kind: input, shape index: {}]
  %s1 = inlined_call_operand.vmem [shape: f32[8,6], index: 1, kind: output, shape index: {}]
  // Predicated region
  $region2: #{tile.13} parent=0 // pred_check
    _
  $region3: #{tile.13} parent=0 // pred_check_branch
    %3 = sbr.rel (0) target = $region5
  $region4: #{tile.13} parent=0 // pred_region
    _
  $region5: #{tile.13} parent=0 // pred_fallthru
    _
  %v4 = vld [vmem:[%s0] ss:$0 sm:$0xff]
  %5 = vst [vmem:[%s1] sm:$0xff] %v4

// kernel: tile.14
$region0: #{tile.14}
  %s0 = inlined_call_operand.vmem [shape: f32[8,6], index: 0, kind: input, shape index: {}]
  %s1 = inlined_call_operand.vmem [shape: f32[1,48], index: 1, kind: output, shape index: {}]
  $region1: #{tile.14} parent=0
    #allocation0 [shape = 'u8[4096]{0}', space=vmem, size = 0x1000, scoped, tag = 'scoped mem for output reshape']
    %v2 = vld [vmem:[%s0] sm:$0x1]
    %vm3 = vcmask 48128
    %4 = vst.msk [vmem:[#allocation0] sm:$0x1] %vm3, %v2
    %s5 = scalar_lea.vmem %s0, 7
    %v6 = vld [vmem:[%s5] sm:$0x1]
    %7 = vrot.lane.b32.xlu0 %v6, 42
    %v8 = vpop.permute.xlu0 %7
    %vm9 = vcmask 392528
    %10 = vst.msk [vmem:[#allocation0] sm:$0x1] %vm9, %v8
    %s11 = scalar_lea.vmem %s0, 6
    %v12 = vld [vmem:[%s11] sm:$0x1]
    %13 = vrot.lane.b32.xlu0 %v12, 36
    %v14 = vpop.permute.xlu0 %13
    %vm15 = vcmask 343328
    %16 = vst.msk [vmem:[#allocation0] sm:$0x1] %vm15, %v14
    %s17 = scalar_lea.vmem %s0, 5
    %v18 = vld [vmem:[%s17] sm:$0x1]
    %19 = vrot.lane.b32.xlu0 %v18, 30
    %v20 = vpop.permute.xlu0 %19
    %vm21 = vcmask 294128
    %22 = vst.msk [vmem:[#allocation0] sm:$0x1] %vm21, %v20
    %s23 = scalar_lea.vmem %s0, 4
    %v24 = vld [vmem:[%s23] sm:$0x1]
    %25 = vrot.lane.b32.xlu0 %v24, 24
    %v26 = vpop.permute.xlu0 %25
    %vm27 = vcmask 244928
    %28 = vst.msk [vmem:[#allocation0] sm:$0x1] %vm27, %v26
    %s29 = scalar_lea.vmem %s0, 3
    %v30 = vld [vmem:[%s29] sm:$0x1]
    %31 = vrot.lane.b32.xlu0 %v30, 18
    %v32 = vpop.permute.xlu0 %31
    %vm33 = vcmask 195728
    %34 = vst.msk [vmem:[#allocation0] sm:$0x1] %vm33, %v32
    %s35 = scalar_lea.vmem %s0, 2
    %v36 = vld [vmem:[%s35] sm:$0x1]
    %37 = vrot.lane.b32.xlu0 %v36, 12
    %v38 = vpop.permute.xlu0 %37
    %vm39 = vcmask 146528
    %40 = vst.msk [vmem:[#allocation0] sm:$0x1] %vm39, %v38
    %s41 = scalar_lea.vmem %s0, 1
    %v42 = vld [vmem:[%s41] sm:$0x1]
    %43 = vrot.lane.b32.xlu0 %v42, 6
    %v44 = vpop.permute.xlu0 %43
    %vm45 = vcmask 97328
    %46 = vst.msk [vmem:[#allocation0] sm:$0x1] %vm45, %v44
    %s48 = ssub.s32 2, 1
    %v49 = vld [vmem:[#allocation0] sm:%s48]
    %s51 = ssub.s32 2, 1
    %52 = vst [vmem:[%s1] sm:%s51] %v49

// kernel: tile.18
$region0: #{tile.18}
  #allocation0 [shape = 's32[1]{0}', space=sflag, size = 0x4, scoped, tag = 'scoped memory for tile.18']
  %s0 = inlined_call_operand.vmem [shape: f32[16], index: 0, kind: input, shape index: {}]
  %s1 = inlined_call_operand.vmem [shape: f32[4,16], index: 1, kind: output, shape index: {}]
  // Predicated region
  $region2: #{tile.18} parent=0 // pred_check
    _
  $region3: #{tile.18} parent=0 // pred_check_branch
    %3 = sbr.rel (0) target = $region5
  $region4: #{tile.18} parent=0 // pred_region
    _
  $region5: #{tile.18} parent=0 // pred_fallthru
    _
  %v4 = vld [vmem:[%s0] ss:$0 sm:$0xff]
  %5 = vst [vmem:[%s1] sm:$0xf] %v4

// kernel: tile.19
$region0: #{tile.19}
  %s0 = inlined_call_operand.vmem [shape: f32[4,16], index: 0, kind: input, shape index: {}]
  %s1 = inlined_call_operand.vmem [shape: f32[1,64], index: 1, kind: output, shape index: {}]
  $region1: #{tile.19} parent=0
    #allocation0 [shape = 'u8[4096]{0}', space=vmem, size = 0x1000, scoped, tag = 'scoped mem for output reshape']
    #allocation1 [shape = 'u8[4096]{0}', space=vmem, size = 0x1000, scoped, tag = 'scoped mem for input reshape']
    %s3 = ssub.s32 16, 1
    %v4 = vld [vmem:[%s0] sm:%s3]
    %5 = vst [vmem:[#allocation1] sm:%s3] %v4
    %v6 = vld [vmem:[#allocation1] sm:$0x1]
    %vm7 = vcmask 130048
    %8 = vst.msk [vmem:[#allocation0] sm:$0x1] %vm7, %v6
    %s9 = scalar_lea.vmem [#allocation1], 3
    %v10 = vld [vmem:[%s9] sm:$0x1]
    %11 = vrot.lane.b32.xlu0 %v10, 48
    %v12 = vpop.permute.xlu0 %11
    %vm13 = vcmask 523648
    %14 = vst.msk [vmem:[#allocation0] sm:$0x1] %vm13, %v12
    %s15 = scalar_lea.vmem [#allocation1], 2
    %v16 = vld [vmem:[%s15] sm:$0x1]
    %17 = vrot.lane.b32.xlu0 %v16, 32
    %v18 = vpop.permute.xlu0 %17
    %vm19 = vcmask 392448
    %20 = vst.msk [vmem:[#allocation0] sm:$0x1] %vm19, %v18
    %s21 = scalar_lea.vmem [#allocation1], 1
    %v22 = vld [vmem:[%s21] sm:$0x1]
    %23 = vrot.lane.b32.xlu0 %v22, 16
    %v24 = vpop.permute.xlu0 %23
    %vm25 = vcmask 261248
    %26 = vst.msk [vmem:[#allocation0] sm:$0x1] %vm25, %v24
    %s28 = ssub.s32 2, 1
    %v29 = vld [vmem:[#allocation0] sm:%s28]
    %s31 = ssub.s32 2, 1
    %32 = vst [vmem:[%s1] sm:%s31] %v29

// kernel: cnn_aaf_forward.1
$region0: #{cnn_aaf_forward.1}
  #allocation0 [shape = 'u32[]', space=smem, size = 0x4, offset = 0x4, fixed_abs, tag = 'smem constant byte address 0x4 - core index']
  #allocation1 [shape = 'u32[72,128]{1,0:T(1,128)}', space=vmem, size = 0x9000, scoped, tag = 'internal scratch']
  %s0 = inlined_call_operand.vmem [shape: f32[20,8,20], index: 0, kind: input, shape index: {}]
  %s1 = inlined_call_operand.vmem [shape: f32[100,96], index: 1, kind: input, shape index: {}]
  %s2 = inlined_call_operand.vmem [shape: f32[1,48], index: 2, kind: input, shape index: {}]
  %s3 = inlined_call_operand.vmem [shape: f32[240,64], index: 3, kind: input, shape index: {}]
  %s4 = inlined_call_operand.vmem [shape: f32[1,64], index: 4, kind: input, shape index: {}]
  %s5 = inlined_call_operand.vmem [shape: f32[64,32], index: 5, kind: input, shape index: {}]
  %s6 = inlined_call_operand.vmem [shape: f32[1,32], index: 6, kind: input, shape index: {}]
  %s7 = inlined_call_operand.vmem [shape: f32[32,16], index: 7, kind: input, shape index: {}]
  %s8 = inlined_call_operand.vmem [shape: f32[1,16], index: 8, kind: input, shape index: {}]
  %s9 = inlined_call_operand.vmem [shape: f32[16,128], index: 9, kind: input, shape index: {}]
  %s10 = inlined_call_operand.vmem [shape: f32[1,128], index: 10, kind: input, shape index: {}]
  %s11 = inlined_call_operand.vmem [shape: f32[8,128], index: 11, kind: output, shape index: {}]
  %s12 = sld [smem:[#allocation0]]
  $region54: #{cnn_aaf_forward.1} parent=0
    _
  %s14 = ssub.s32 1, %s12
  %s15 = scalar_select 0, %s14, %s12
  // Predicated region
  $region2: #{cnn_aaf_forward.1} parent=0 // pred_check
    _
  $region3: #{cnn_aaf_forward.1} parent=0 // pred_check_branch
    %17 = sbr.rel (0) target = $region5
  $region4: #{cnn_aaf_forward.1} parent=0 // pred_region
    _
  $region5: #{cnn_aaf_forward.1} parent=0 // pred_fallthru
    _
  // Predicated region
  $region6: #{cnn_aaf_forward.1} parent=0 // pred_check
    _
  $region7: #{cnn_aaf_forward.1} parent=0 // pred_check_branch
    %19 = sbr.rel (0) target = $region9
  $region8: #{cnn_aaf_forward.1} parent=0 // pred_region
    _
  $region9: #{cnn_aaf_forward.1} parent=0 // pred_fallthru
    _
  // Predicated region
  $region10: #{cnn_aaf_forward.1} parent=0 // pred_check
    _
  $region11: #{cnn_aaf_forward.1} parent=0 // pred_check_branch
    %21 = sbr.rel (0) target = $region13
  $region12: #{cnn_aaf_forward.1} parent=0 // pred_region
    _
  $region13: #{cnn_aaf_forward.1} parent=0 // pred_fallthru
    _
  // Predicated region
  $region14: #{cnn_aaf_forward.1} parent=0 // pred_check
    _
  $region15: #{cnn_aaf_forward.1} parent=0 // pred_check_branch
    %23 = sbr.rel (0) target = $region17
  $region16: #{cnn_aaf_forward.1} parent=0 // pred_region
    _
  $region17: #{cnn_aaf_forward.1} parent=0 // pred_fallthru
    _
  // Predicated region
  $region18: #{cnn_aaf_forward.1} parent=0 // pred_check
    _
  $region19: #{cnn_aaf_forward.1} parent=0 // pred_check_branch
    %25 = sbr.rel (0) target = $region21
  $region20: #{cnn_aaf_forward.1} parent=0 // pred_region
    _
  $region21: #{cnn_aaf_forward.1} parent=0 // pred_fallthru
    _
  // Predicated region
  $region22: #{cnn_aaf_forward.1} parent=0 // pred_check
    _
  $region23: #{cnn_aaf_forward.1} parent=0 // pred_check_branch
    %27 = sbr.rel (0) target = $region25
  $region24: #{cnn_aaf_forward.1} parent=0 // pred_region
    _
  $region25: #{cnn_aaf_forward.1} parent=0 // pred_fallthru
    _
  // Predicated region
  $region26: #{cnn_aaf_forward.1} parent=0 // pred_check
    _
  $region27: #{cnn_aaf_forward.1} parent=0 // pred_check_branch
    %29 = sbr.rel (0) target = $region29
  $region28: #{cnn_aaf_forward.1} parent=0 // pred_region
    _
  $region29: #{cnn_aaf_forward.1} parent=0 // pred_fallthru
    _
  // Predicated region
  $region30: #{cnn_aaf_forward.1} parent=0 // pred_check
    _
  $region31: #{cnn_aaf_forward.1} parent=0 // pred_check_branch
    %31 = sbr.rel (0) target = $region33
  $region32: #{cnn_aaf_forward.1} parent=0 // pred_region
    _
  $region33: #{cnn_aaf_forward.1} parent=0 // pred_fallthru
    _
  // Predicated region
  $region34: #{cnn_aaf_forward.1} parent=0 // pred_check
    _
  $region35: #{cnn_aaf_forward.1} parent=0 // pred_check_branch
    %33 = sbr.rel (0) target = $region37
  $region36: #{cnn_aaf_forward.1} parent=0 // pred_region
    _
  $region37: #{cnn_aaf_forward.1} parent=0 // pred_fallthru
    _
  // Predicated region
  $region38: #{cnn_aaf_forward.1} parent=0 // pred_check
    _
  $region39: #{cnn_aaf_forward.1} parent=0 // pred_check_branch
    %35 = sbr.rel (0) target = $region41
  $region40: #{cnn_aaf_forward.1} parent=0 // pred_region
    _
  $region41: #{cnn_aaf_forward.1} parent=0 // pred_fallthru
    _
  // Predicated region
  $region42: #{cnn_aaf_forward.1} parent=0 // pred_check
    _
  $region43: #{cnn_aaf_forward.1} parent=0 // pred_check_branch
    %37 = sbr.rel (0) target = $region45
  $region44: #{cnn_aaf_forward.1} parent=0 // pred_region
    _
  $region45: #{cnn_aaf_forward.1} parent=0 // pred_fallthru
    _
  %v38 = vld [vmem:[%s0] sm:$0xff]
  %v39 = vld [vmem:[%s0 + $0x8] sm:$0xff]
  %v40 = vld [vmem:[%s0 + $0x10] sm:$0xff]
  %v41 = vld [vmem:[%s0 + $0x18] sm:$0xff]
  %v42 = vld [vmem:[%s0 + $0x20] sm:$0xff]
  %v43 = vld [vmem:[%s0 + $0x28] sm:$0xff]
  %v44 = vld [vmem:[%s0 + $0x30] sm:$0xff]
  %v45 = vld [vmem:[%s0 + $0x38] sm:$0xff]
  %v46 = vld [vmem:[%s0 + $0x40] sm:$0xff]
  %v47 = vld [vmem:[%s0 + $0x48] sm:$0xff]
  %v48 = vld [vmem:[%s0 + $0x50] sm:$0xff]
  %v49 = vld [vmem:[%s0 + $0x58] sm:$0xff]
  %v50 = vld [vmem:[%s0 + $0x60] sm:$0xff]
  %v51 = vld [vmem:[%s0 + $0x68] sm:$0xff]
  %v52 = vld [vmem:[%s0 + $0x70] sm:$0xff]
  %v53 = vld [vmem:[%s0 + $0x78] sm:$0xff]
  %v54 = vld [vmem:[%s0 + $0x80] sm:$0xff]
  %v55 = vld [vmem:[%s0 + $0x88] sm:$0xff]
  %v56 = vld [vmem:[%s0 + $0x90] sm:$0xff]
  %v57 = vld [vmem:[%s0 + $0x98] sm:$0xff]
  %66 = vrot.lane.b32.xlu0 %v48, 20
  %v67 = vpop.permute.xlu0 %66
  %68 = vrot.lane.b32.xlu0 %v49, 20
  %v69 = vpop.permute.xlu0 %68
  %70 = vrot.lane.b32.xlu0 %v50, 20
  %v71 = vpop.permute.xlu0 %70
  %72 = vrot.lane.b32.xlu0 %v51, 20
  %v73 = vpop.permute.xlu0 %72
  %74 = vrot.lane.b32.xlu0 %v52, 20
  %v75 = vpop.permute.xlu0 %74
  %76 = vrot.lane.b32.xlu0 %v53, 20
  %v77 = vpop.permute.xlu0 %76
  %78 = vrot.lane.b32.xlu0 %v54, 20
  %v79 = vpop.permute.xlu0 %78
  %80 = vrot.lane.b32.xlu0 %v55, 20
  %v81 = vpop.permute.xlu0 %80
  %98 = vrot.lane.b32.xlu0 %v39, 40
  %v99 = vpop.permute.xlu0 %98
  %100 = vrot.lane.b32.xlu0 %v40, 40
  %v101 = vpop.permute.xlu0 %100
  %102 = vrot.lane.b32.xlu0 %v41, 40
  %v103 = vpop.permute.xlu0 %102
  %104 = vrot.lane.b32.xlu0 %v42, 40
  %v105 = vpop.permute.xlu0 %104
  %106 = vrot.lane.b32.xlu0 %v43, 40
  %v107 = vpop.permute.xlu0 %106
  %108 = vrot.lane.b32.xlu0 %v44, 40
  %v109 = vpop.permute.xlu0 %108
  %110 = vrot.lane.b32.xlu0 %v45, 40
  %v111 = vpop.permute.xlu0 %110
  %112 = vrot.lane.b32.xlu0 %v46, 40
  %v113 = vpop.permute.xlu0 %112
  %123 = vrot.lane.b32.xlu0 %v49, 60
  %v124 = vpop.permute.xlu0 %123
  %125 = vrot.lane.b32.xlu0 %v50, 60
  %v126 = vpop.permute.xlu0 %125
  %127 = vrot.lane.b32.xlu0 %v51, 60
  %v128 = vpop.permute.xlu0 %127
  %129 = vrot.lane.b32.xlu0 %v52, 60
  %v130 = vpop.permute.xlu0 %129
  %131 = vrot.lane.b32.xlu0 %v53, 60
  %v132 = vpop.permute.xlu0 %131
  %133 = vrot.lane.b32.xlu0 %v54, 60
  %v134 = vpop.permute.xlu0 %133
  %135 = vrot.lane.b32.xlu0 %v55, 60
  %v136 = vpop.permute.xlu0 %135
  %137 = vrot.lane.b32.xlu0 %v56, 60
  %v138 = vpop.permute.xlu0 %137
  %148 = vrot.lane.b32.xlu0 %v40, 80
  %v149 = vpop.permute.xlu0 %148
  %150 = vrot.lane.b32.xlu0 %v41, 80
  %v151 = vpop.permute.xlu0 %150
  %152 = vrot.lane.b32.xlu0 %v42, 80
  %v153 = vpop.permute.xlu0 %152
  %154 = vrot.lane.b32.xlu0 %v43, 80
  %v155 = vpop.permute.xlu0 %154
  %156 = vrot.lane.b32.xlu0 %v44, 80
  %v157 = vpop.permute.xlu0 %156
  %158 = vrot.lane.b32.xlu0 %v45, 80
  %v159 = vpop.permute.xlu0 %158
  %160 = vrot.lane.b32.xlu0 %v46, 80
  %v161 = vpop.permute.xlu0 %160
  %162 = vrot.lane.b32.xlu0 %v47, 80
  %v163 = vpop.permute.xlu0 %162
  %vm172 = vcmask 162816
  %v173 = vsel %vm172, %v38, %v67
  %v174 = vsel %vm172, %v39, %v69
  %v175 = vsel %vm172, %v40, %v71
  %v176 = vsel %vm172, %v41, %v73
  %v177 = vsel %vm172, %v42, %v75
  %v178 = vsel %vm172, %v43, %v77
  %v179 = vsel %vm172, %v44, %v79
  %v180 = vsel %vm172, %v45, %v81
  %vm181 = vcmask 326656
  %v182 = vsel %vm181, %v173, %v99
  %v183 = vsel %vm181, %v174, %v101
  %v184 = vsel %vm181, %v175, %v103
  %v185 = vsel %vm181, %v176, %v105
  %v186 = vsel %vm181, %v177, %v107
  %v187 = vsel %vm181, %v178, %v109
  %v188 = vsel %vm181, %v179, %v111
  %v189 = vsel %vm181, %v180, %v113
  %vm190 = vcmask 490496
  %v191 = vsel %vm190, %v182, %v124
  %v192 = vsel %vm190, %v183, %v126
  %v193 = vsel %vm190, %v184, %v128
  %v194 = vsel %vm190, %v185, %v130
  %v195 = vsel %vm190, %v186, %v132
  %v196 = vsel %vm190, %v187, %v134
  %v197 = vsel %vm190, %v188, %v136
  %v198 = vsel %vm190, %v189, %v138
  %vm199 = vcmask 654336
  %v200 = vsel %vm199, %v191, %v149
  %v201 = vsel %vm199, %v192, %v151
  %v202 = vsel %vm199, %v193, %v153
  %v203 = vsel %vm199, %v194, %v155
  %v204 = vsel %vm199, %v195, %v157
  %v205 = vsel %vm199, %v196, %v159
  %v206 = vsel %vm199, %v197, %v161
  %v207 = vsel %vm199, %v198, %v163
  %v208 = vld [vmem:[%s1] sm:$0xff]
  %v209 = vld [vmem:[%s1 + $0x8] sm:$0xff]
  %v210 = vld [vmem:[%s1 + $0x10] sm:$0xff]
  %v211 = vld [vmem:[%s1 + $0x18] sm:$0xff]
  %v212 = vld [vmem:[%s1 + $0x20] sm:$0xff]
  %v213 = vld [vmem:[%s1 + $0x28] sm:$0xff]
  %v214 = vld [vmem:[%s1 + $0x30] sm:$0xff]
  %v215 = vld [vmem:[%s1 + $0x38] sm:$0xff]
  %v216 = vld [vmem:[%s1 + $0x40] sm:$0xff]
  %v217 = vld [vmem:[%s1 + $0x48] sm:$0xff]
  %v218 = vld [vmem:[%s1 + $0x50] sm:$0xff]
  %v219 = vld [vmem:[%s1 + $0x58] sm:$0xff]
  %v220 = vld [vmem:[%s1 + $0x60] sm:$0xf]
  %vm221 = vcmask 818176
  %v223 = vsel %vm221, %v200, 0
  %v226 = vsel %vm221, %v201, 0
  %v229 = vsel %vm221, %v202, 0
  %v232 = vsel %vm221, %v203, 0
  %v235 = vsel %vm221, %v204, 0
  %v238 = vsel %vm221, %v205, 0
  %v241 = vsel %vm221, %v206, 0
  %v244 = vsel %vm221, %v207, 0
  %vm246 = vcmask 1043456
  %v248 = vsel %vm246, %v220, 0
  %250 = vmatpush.msra.mxu0 0.0
  %251 = vmatpush.msra.mxu0 0.0
  %252 = vmatpush.msra.mxu0 0.0
  %253 = vmatpush.msra.mxu0 %v248
  %254 = vmatpush.msra.mxu0 %v219
  %255 = vmatpush.msra.mxu0 %v218
  %256 = vmatpush.msra.mxu0 %v217
  %257 = vmatpush.msra.mxu0 %v216
  %258 = vmatpush.msra.mxu0 %v215
  %259 = vmatpush.msra.mxu0 %v214
  %260 = vmatpush.msra.mxu0 %v213
  %261 = vmatpush.msra.mxu0 %v212
  %262 = vmatpush.msra.mxu0 %v211
  %263 = vmatpush.msra.mxu0 %v210
  %264 = vmatpush.msra.mxu0 %v209
  %265 = vmatpush.msra.mxu0 %v208
  %266 = vmatmul.f32.gmra.mxu0 %v223
  %v267 = vpop.f32.mrf.mxu0
  %v268 = vadd.f32 0.0, %v267
  %269 = vmatmul.f32.gmra.mxu0 %v226
  %v270 = vpop.f32.mrf.mxu0
  %v271 = vadd.f32 0.0, %v270
  %272 = vmatmul.f32.gmra.mxu0 %v229
  %v273 = vpop.f32.mrf.mxu0
  %v274 = vadd.f32 0.0, %v273
  %275 = vmatmul.f32.gmra.mxu0 %v232
  %v276 = vpop.f32.mrf.mxu0
  %v277 = vadd.f32 0.0, %v276
  %278 = vmatmul.f32.gmra.mxu0 %v235
  %v279 = vpop.f32.mrf.mxu0
  %v280 = vadd.f32 0.0, %v279
  %281 = vmatmul.f32.gmra.mxu0 %v238
  %v282 = vpop.f32.mrf.mxu0
  %v283 = vadd.f32 0.0, %v282
  %284 = vmatmul.f32.gmra.mxu0 %v241
  %v285 = vpop.f32.mrf.mxu0
  %v286 = vadd.f32 0.0, %v285
  %287 = vmatmul.f32.gmra.mxu0 %v244
  %v288 = vpop.f32.mrf.mxu0
  %v289 = vadd.f32 0.0, %v288
  %290 = vdwg.mxu0
  %291 = vrot.lane.b32.xlu0 %v39, 20
  %v292 = vpop.permute.xlu0 %291
  %293 = vrot.lane.b32.xlu0 %v40, 20
  %v294 = vpop.permute.xlu0 %293
  %295 = vrot.lane.b32.xlu0 %v41, 20
  %v296 = vpop.permute.xlu0 %295
  %297 = vrot.lane.b32.xlu0 %v42, 20
  %v298 = vpop.permute.xlu0 %297
  %299 = vrot.lane.b32.xlu0 %v43, 20
  %v300 = vpop.permute.xlu0 %299
  %301 = vrot.lane.b32.xlu0 %v44, 20
  %v302 = vpop.permute.xlu0 %301
  %303 = vrot.lane.b32.xlu0 %v45, 20
  %v304 = vpop.permute.xlu0 %303
  %305 = vrot.lane.b32.xlu0 %v46, 20
  %v306 = vpop.permute.xlu0 %305
  %315 = vrot.lane.b32.xlu0 %v49, 40
  %v316 = vpop.permute.xlu0 %315
  %317 = vrot.lane.b32.xlu0 %v50, 40
  %v318 = vpop.permute.xlu0 %317
  %319 = vrot.lane.b32.xlu0 %v51, 40
  %v320 = vpop.permute.xlu0 %319
  %321 = vrot.lane.b32.xlu0 %v52, 40
  %v322 = vpop.permute.xlu0 %321
  %323 = vrot.lane.b32.xlu0 %v53, 40
  %v324 = vpop.permute.xlu0 %323
  %325 = vrot.lane.b32.xlu0 %v54, 40
  %v326 = vpop.permute.xlu0 %325
  %327 = vrot.lane.b32.xlu0 %v55, 40
  %v328 = vpop.permute.xlu0 %327
  %329 = vrot.lane.b32.xlu0 %v56, 40
  %v330 = vpop.permute.xlu0 %329
  %339 = vrot.lane.b32.xlu0 %v40, 60
  %v340 = vpop.permute.xlu0 %339
  %341 = vrot.lane.b32.xlu0 %v41, 60
  %v342 = vpop.permute.xlu0 %341
  %343 = vrot.lane.b32.xlu0 %v42, 60
  %v344 = vpop.permute.xlu0 %343
  %345 = vrot.lane.b32.xlu0 %v43, 60
  %v346 = vpop.permute.xlu0 %345
  %347 = vrot.lane.b32.xlu0 %v44, 60
  %v348 = vpop.permute.xlu0 %347
  %349 = vrot.lane.b32.xlu0 %v45, 60
  %v350 = vpop.permute.xlu0 %349
  %351 = vrot.lane.b32.xlu0 %v46, 60
  %v352 = vpop.permute.xlu0 %351
  %353 = vrot.lane.b32.xlu0 %v47, 60
  %v354 = vpop.permute.xlu0 %353
  %364 = vrot.lane.b32.xlu0 %v50, 80
  %v365 = vpop.permute.xlu0 %364
  %366 = vrot.lane.b32.xlu0 %v51, 80
  %v367 = vpop.permute.xlu0 %366
  %368 = vrot.lane.b32.xlu0 %v52, 80
  %v369 = vpop.permute.xlu0 %368
  %370 = vrot.lane.b32.xlu0 %v53, 80
  %v371 = vpop.permute.xlu0 %370
  %372 = vrot.lane.b32.xlu0 %v54, 80
  %v373 = vpop.permute.xlu0 %372
  %374 = vrot.lane.b32.xlu0 %v55, 80
  %v375 = vpop.permute.xlu0 %374
  %376 = vrot.lane.b32.xlu0 %v56, 80
  %v377 = vpop.permute.xlu0 %376
  %378 = vrot.lane.b32.xlu0 %v57, 80
  %v379 = vpop.permute.xlu0 %378
  %v388 = vsel %vm172, %v48, %v292
  %v389 = vsel %vm172, %v49, %v294
  %v390 = vsel %vm172, %v50, %v296
  %v391 = vsel %vm172, %v51, %v298
  %v392 = vsel %vm172, %v52, %v300
  %v393 = vsel %vm172, %v53, %v302
  %v394 = vsel %vm172, %v54, %v304
  %v395 = vsel %vm172, %v55, %v306
  %v396 = vsel %vm181, %v388, %v316
  %v397 = vsel %vm181, %v389, %v318
  %v398 = vsel %vm181, %v390, %v320
  %v399 = vsel %vm181, %v391, %v322
  %v400 = vsel %vm181, %v392, %v324
  %v401 = vsel %vm181, %v393, %v326
  %v402 = vsel %vm181, %v394, %v328
  %v403 = vsel %vm181, %v395, %v330
  %v404 = vsel %vm190, %v396, %v340
  %v405 = vsel %vm190, %v397, %v342
  %v406 = vsel %vm190, %v398, %v344
  %v407 = vsel %vm190, %v399, %v346
  %v408 = vsel %vm190, %v400, %v348
  %v409 = vsel %vm190, %v401, %v350
  %v410 = vsel %vm190, %v402, %v352
  %v411 = vsel %vm190, %v403, %v354
  %v412 = vsel %vm199, %v404, %v365
  %v413 = vsel %vm199, %v405, %v367
  %v414 = vsel %vm199, %v406, %v369
  %v415 = vsel %vm199, %v407, %v371
  %v416 = vsel %vm199, %v408, %v373
  %v417 = vsel %vm199, %v409, %v375
  %v418 = vsel %vm199, %v410, %v377
  %v419 = vsel %vm199, %v411, %v379
  %v421 = vsel %vm221, %v412, 0
  %v424 = vsel %vm221, %v413, 0
  %v427 = vsel %vm221, %v414, 0
  %v430 = vsel %vm221, %v415, 0
  %v433 = vsel %vm221, %v416, 0
  %v436 = vsel %vm221, %v417, 0
  %v439 = vsel %vm221, %v418, 0
  %v442 = vsel %vm221, %v419, 0
  %444 = vmatpush.msra.mxu0 0.0
  %445 = vmatpush.msra.mxu0 0.0
  %446 = vmatpush.msra.mxu0 0.0
  %447 = vmatpush.msra.mxu0 %v248
  %448 = vmatpush.msra.mxu0 %v219
  %449 = vmatpush.msra.mxu0 %v218
  %450 = vmatpush.msra.mxu0 %v217
  %451 = vmatpush.msra.mxu0 %v216
  %452 = vmatpush.msra.mxu0 %v215
  %453 = vmatpush.msra.mxu0 %v214
  %454 = vmatpush.msra.mxu0 %v213
  %455 = vmatpush.msra.mxu0 %v212
  %456 = vmatpush.msra.mxu0 %v211
  %457 = vmatpush.msra.mxu0 %v210
  %458 = vmatpush.msra.mxu0 %v209
  %459 = vmatpush.msra.mxu0 %v208
  %460 = vmatmul.f32.gmra.mxu0 %v421
  %v461 = vpop.f32.mrf.mxu0
  %v462 = vadd.f32 0.0, %v461
  %463 = vmatmul.f32.gmra.mxu0 %v424
  %v464 = vpop.f32.mrf.mxu0
  %v465 = vadd.f32 0.0, %v464
  %466 = vmatmul.f32.gmra.mxu0 %v427
  %v467 = vpop.f32.mrf.mxu0
  %v468 = vadd.f32 0.0, %v467
  %469 = vmatmul.f32.gmra.mxu0 %v430
  %v470 = vpop.f32.mrf.mxu0
  %v471 = vadd.f32 0.0, %v470
  %472 = vmatmul.f32.gmra.mxu0 %v433
  %v473 = vpop.f32.mrf.mxu0
  %v474 = vadd.f32 0.0, %v473
  %475 = vmatmul.f32.gmra.mxu0 %v436
  %v476 = vpop.f32.mrf.mxu0
  %v477 = vadd.f32 0.0, %v476
  %478 = vmatmul.f32.gmra.mxu0 %v439
  %v479 = vpop.f32.mrf.mxu0
  %v480 = vadd.f32 0.0, %v479
  %481 = vmatmul.f32.gmra.mxu0 %v442
  %v482 = vpop.f32.mrf.mxu0
  %v483 = vadd.f32 0.0, %v482
  %484 = vdwg.mxu0
  %493 = vrot.lane.b32.xlu0 %v268, 80
  %v494 = vpop.permute.xlu0 %493
  %495 = vrot.lane.b32.xlu0 %v271, 80
  %v496 = vpop.permute.xlu0 %495
  %497 = vrot.lane.b32.xlu0 %v274, 80
  %v498 = vpop.permute.xlu0 %497
  %499 = vrot.lane.b32.xlu0 %v277, 80
  %v500 = vpop.permute.xlu0 %499
  %501 = vrot.lane.b32.xlu0 %v280, 80
  %v502 = vpop.permute.xlu0 %501
  %503 = vrot.lane.b32.xlu0 %v283, 80
  %v504 = vpop.permute.xlu0 %503
  %505 = vrot.lane.b32.xlu0 %v286, 80
  %v506 = vpop.permute.xlu0 %505
  %507 = vrot.lane.b32.xlu0 %v289, 80
  %v508 = vpop.permute.xlu0 %507
  %v517 = vmax.f32 %v268, %v494
  %v518 = vmax.f32 %v271, %v496
  %v519 = vmax.f32 %v274, %v498
  %v520 = vmax.f32 %v277, %v500
  %v521 = vmax.f32 %v280, %v502
  %v522 = vmax.f32 %v283, %v504
  %v523 = vmax.f32 %v286, %v506
  %v524 = vmax.f32 %v289, %v508
  %533 = vrot.lane.b32.xlu0 %v462, 80
  %v534 = vpop.permute.xlu0 %533
  %535 = vrot.lane.b32.xlu0 %v465, 80
  %v536 = vpop.permute.xlu0 %535
  %537 = vrot.lane.b32.xlu0 %v468, 80
  %v538 = vpop.permute.xlu0 %537
  %539 = vrot.lane.b32.xlu0 %v471, 80
  %v540 = vpop.permute.xlu0 %539
  %541 = vrot.lane.b32.xlu0 %v474, 80
  %v542 = vpop.permute.xlu0 %541
  %543 = vrot.lane.b32.xlu0 %v477, 80
  %v544 = vpop.permute.xlu0 %543
  %545 = vrot.lane.b32.xlu0 %v480, 80
  %v546 = vpop.permute.xlu0 %545
  %547 = vrot.lane.b32.xlu0 %v483, 80
  %v548 = vpop.permute.xlu0 %547
  %v557 = vmax.f32 %v462, %v534
  %v558 = vmax.f32 %v465, %v536
  %v559 = vmax.f32 %v468, %v538
  %v560 = vmax.f32 %v471, %v540
  %v561 = vmax.f32 %v474, %v542
  %v562 = vmax.f32 %v477, %v544
  %v563 = vmax.f32 %v480, %v546
  %v564 = vmax.f32 %v483, %v548
  %v565 = vmax.f32 %v517, %v557
  %v566 = vmax.f32 %v518, %v558
  %v567 = vmax.f32 %v519, %v559
  %v568 = vmax.f32 %v520, %v560
  %v569 = vmax.f32 %v521, %v561
  %v570 = vmax.f32 %v522, %v562
  %v571 = vmax.f32 %v523, %v563
  %v572 = vmax.f32 %v524, %v564
  %v573 = vld [vmem:[%s2] sm:$0x1]
  %v575 = vperm.slane %v573, 0
  %v577 = vadd.f32 %v565, %v575
  %v578 = vadd.f32 %v566, %v575
  %v579 = vadd.f32 %v567, %v575
  %v580 = vadd.f32 %v568, %v575
  %v581 = vadd.f32 %v569, %v575
  %v582 = vadd.f32 %v570, %v575
  %v583 = vadd.f32 %v571, %v575
  %v584 = vadd.f32 %v572, %v575
  %v585 = vmax.f32 %v577, 0.0
  %v586 = vmax.f32 %v578, 0.0
  %v587 = vmax.f32 %v579, 0.0
  %v588 = vmax.f32 %v580, 0.0
  %v589 = vmax.f32 %v581, 0.0
  %v590 = vmax.f32 %v582, 0.0
  %v591 = vmax.f32 %v583, 0.0
  %v592 = vmax.f32 %v584, 0.0
  %597 = vrot.lane.b32.xlu0 %v586, 48
  %v598 = vpop.permute.xlu0 %597
  %599 = vrot.lane.b32.xlu0 %v587, 48
  %v600 = vpop.permute.xlu0 %599
  %601 = vrot.lane.b32.xlu0 %v588, 48
  %v602 = vpop.permute.xlu0 %601
  %603 = vrot.lane.b32.xlu0 %v589, 48
  %v604 = vpop.permute.xlu0 %603
  %610 = vrot.lane.b32.xlu0 %v587, 96
  %v611 = vpop.permute.xlu0 %610
  %612 = vrot.lane.b32.xlu0 %v588, 96
  %v613 = vpop.permute.xlu0 %612
  %614 = vrot.lane.b32.xlu0 %v589, 96
  %v615 = vpop.permute.xlu0 %614
  %616 = vrot.lane.b32.xlu0 %v590, 96
  %v617 = vpop.permute.xlu0 %616
  %623 = vrot.lane.b32.xlu0 %v588, 16
  %v624 = vpop.permute.xlu0 %623
  %625 = vrot.lane.b32.xlu0 %v589, 16
  %v626 = vpop.permute.xlu0 %625
  %627 = vrot.lane.b32.xlu0 %v590, 16
  %v628 = vpop.permute.xlu0 %627
  %629 = vrot.lane.b32.xlu0 %v591, 16
  %v630 = vpop.permute.xlu0 %629
  %636 = vrot.lane.b32.xlu0 %v589, 64
  %v637 = vpop.permute.xlu0 %636
  %638 = vrot.lane.b32.xlu0 %v590, 64
  %v639 = vpop.permute.xlu0 %638
  %640 = vrot.lane.b32.xlu0 %v591, 64
  %v641 = vpop.permute.xlu0 %640
  %642 = vrot.lane.b32.xlu0 %v592, 64
  %v643 = vpop.permute.xlu0 %642
  %vm648 = vcmask 392192
  %v649 = vsel %vm648, %v585, %v598
  %v650 = vsel %vm648, %v586, %v600
  %v651 = vsel %vm648, %v587, %v602
  %v652 = vsel %vm648, %v588, %v604
  %vm653 = vcmask 785408
  %v654 = vsel %vm653, %v649, %v611
  %v655 = vsel %vm653, %v650, %v613
  %v656 = vsel %vm653, %v651, %v615
  %v657 = vsel %vm653, %v652, %v617
  %vm658 = vcmask 130048
  %v659 = vsel %vm658, %v611, %v624
  %v660 = vsel %vm658, %v613, %v626
  %v661 = vsel %vm658, %v615, %v628
  %v662 = vsel %vm658, %v617, %v630
  %vm663 = vcmask 523264
  %v664 = vsel %vm663, %v659, %v637
  %v665 = vsel %vm663, %v660, %v639
  %v666 = vsel %vm663, %v661, %v641
  %v667 = vsel %vm663, %v662, %v643
  %v668 = vld [vmem:[%s3] sm:$0xff]
  %v669 = vld [vmem:[%s3 + $0x8] sm:$0xff]
  %v670 = vld [vmem:[%s3 + $0x10] sm:$0xff]
  %v671 = vld [vmem:[%s3 + $0x18] sm:$0xff]
  %v672 = vld [vmem:[%s3 + $0x20] sm:$0xff]
  %v673 = vld [vmem:[%s3 + $0x28] sm:$0xff]
  %v674 = vld [vmem:[%s3 + $0x30] sm:$0xff]
  %v675 = vld [vmem:[%s3 + $0x38] sm:$0xff]
  %v676 = vld [vmem:[%s3 + $0x40] sm:$0xff]
  %v677 = vld [vmem:[%s3 + $0x48] sm:$0xff]
  %v678 = vld [vmem:[%s3 + $0x50] sm:$0xff]
  %v679 = vld [vmem:[%s3 + $0x58] sm:$0xff]
  %v680 = vld [vmem:[%s3 + $0x60] sm:$0xff]
  %v681 = vld [vmem:[%s3 + $0x68] sm:$0xff]
  %v682 = vld [vmem:[%s3 + $0x70] sm:$0xff]
  %v683 = vld [vmem:[%s3 + $0x78] sm:$0xff]
  %v684 = vld [vmem:[%s3 + $0x80] sm:$0xff]
  %v685 = vld [vmem:[%s3 + $0x88] sm:$0xff]
  %v686 = vld [vmem:[%s3 + $0x90] sm:$0xff]
  %v687 = vld [vmem:[%s3 + $0x98] sm:$0xff]
  %v688 = vld [vmem:[%s3 + $0xa0] sm:$0xff]
  %v689 = vld [vmem:[%s3 + $0xa8] sm:$0xff]
  %v690 = vld [vmem:[%s3 + $0xb0] sm:$0xff]
  %v691 = vld [vmem:[%s3 + $0xb8] sm:$0xff]
  %v692 = vld [vmem:[%s3 + $0xc0] sm:$0xff]
  %v693 = vld [vmem:[%s3 + $0xc8] sm:$0xff]
  %v694 = vld [vmem:[%s3 + $0xd0] sm:$0xff]
  %v695 = vld [vmem:[%s3 + $0xd8] sm:$0xff]
  %v696 = vld [vmem:[%s3 + $0xe0] sm:$0xff]
  %v697 = vld [vmem:[%s3 + $0xe8] sm:$0xff]
  %v698 = vld [vmem:[%s4] sm:$0x1]
  %v700 = vperm.slane %v698, 0
  %vm702 = vcmask 916480
  %v704 = vsel %vm702, %v664, 0
  %v707 = vsel %vm702, %v665, 0
  %v710 = vsel %vm702, %v666, 0
  %v713 = vsel %vm702, %v667, 0
  %715 = vmatpush.msra.mxu0 %v683
  %716 = vmatpush.msra.mxu0 %v682
  %717 = vmatpush.msra.mxu0 %v681
  %718 = vmatpush.msra.mxu0 %v680
  %719 = vmatpush.msra.mxu0 %v679
  %720 = vmatpush.msra.mxu0 %v678
  %721 = vmatpush.msra.mxu0 %v677
  %722 = vmatpush.msra.mxu0 %v676
  %723 = vmatpush.msra.mxu0 %v675
  %724 = vmatpush.msra.mxu0 %v674
  %725 = vmatpush.msra.mxu0 %v673
  %726 = vmatpush.msra.mxu0 %v672
  %727 = vmatpush.msra.mxu0 %v671
  %728 = vmatpush.msra.mxu0 %v670
  %729 = vmatpush.msra.mxu0 %v669
  %730 = vmatpush.msra.mxu0 %v668
  %731 = vmatmul.f32.gmra.mxu0 %v654
  %v732 = vpop.f32.mrf.mxu0
  %v733 = vadd.f32 %v700, %v732
  %734 = vmatmul.f32.gmra.mxu0 %v655
  %v735 = vpop.f32.mrf.mxu0
  %v736 = vadd.f32 %v700, %v735
  %737 = vmatmul.f32.gmra.mxu0 %v656
  %v738 = vpop.f32.mrf.mxu0
  %v739 = vadd.f32 %v700, %v738
  %740 = vmatmul.f32.gmra.mxu0 %v657
  %v741 = vpop.f32.mrf.mxu0
  %v742 = vadd.f32 %v700, %v741
  %743 = vdwg.mxu0
  %744 = vmatpush.msra.mxu0 0.0
  %745 = vmatpush.msra.mxu0 0.0
  %746 = vmatpush.msra.mxu0 %v697
  %747 = vmatpush.msra.mxu0 %v696
  %748 = vmatpush.msra.mxu0 %v695
  %749 = vmatpush.msra.mxu0 %v694
  %750 = vmatpush.msra.mxu0 %v693
  %751 = vmatpush.msra.mxu0 %v692
  %752 = vmatpush.msra.mxu0 %v691
  %753 = vmatpush.msra.mxu0 %v690
  %754 = vmatpush.msra.mxu0 %v689
  %755 = vmatpush.msra.mxu0 %v688
  %756 = vmatpush.msra.mxu0 %v687
  %757 = vmatpush.msra.mxu0 %v686
  %758 = vmatpush.msra.mxu0 %v685
  %759 = vmatpush.msra.mxu0 %v684
  %760 = vmatmul.f32.gmra.mxu0 %v704
  %v761 = vpop.f32.mrf.mxu0
  %v762 = vadd.f32 %v733, %v761
  %763 = vmatmul.f32.gmra.mxu0 %v707
  %v764 = vpop.f32.mrf.mxu0
  %v765 = vadd.f32 %v736, %v764
  %766 = vmatmul.f32.gmra.mxu0 %v710
  %v767 = vpop.f32.mrf.mxu0
  %v768 = vadd.f32 %v739, %v767
  %769 = vmatmul.f32.gmra.mxu0 %v713
  %v770 = vpop.f32.mrf.mxu0
  %v771 = vadd.f32 %v742, %v770
  %772 = vdwg.mxu0
  %v773 = vmax.f32 %v762, 0.0
  %v774 = vmax.f32 %v765, 0.0
  %v775 = vmax.f32 %v768, 0.0
  %v776 = vmax.f32 %v771, 0.0
  %v777 = vmax.f32 %v773, %v774
  %v778 = vmax.f32 %v775, %v776
  %780 = vrot.lane.b32.xlu0 %v777, 112
  %v781 = vpop.permute.xlu0 %780
  %v783 = vmax.f32 %v777, %v781
  %785 = vrot.lane.b32.xlu0 %v778, 112
  %v786 = vpop.permute.xlu0 %785
  %v788 = vmax.f32 %v778, %v786
  %790 = vrot.lane.b32.xlu0 %v783, 112
  %v791 = vpop.permute.xlu0 %790
  %794 = vrot.lane.b32.xlu0 %v788, 32
  %v795 = vpop.permute.xlu0 %794
  %797 = vrot.lane.b32.xlu0 %v788, 16
  %v798 = vpop.permute.xlu0 %797
  %v800 = vsel %vm658, %v783, %v791
  %vm801 = vcmask 261120
  %v802 = vsel %vm801, %v800, %v795
  %v803 = vsel %vm648, %v802, %v798
  %v804 = vld [vmem:[%s5] sm:$0xff]
  %v805 = vld [vmem:[%s5 + $0x8] sm:$0xff]
  %v806 = vld [vmem:[%s5 + $0x10] sm:$0xff]
  %v807 = vld [vmem:[%s5 + $0x18] sm:$0xff]
  %v808 = vld [vmem:[%s5 + $0x20] sm:$0xff]
  %v809 = vld [vmem:[%s5 + $0x28] sm:$0xff]
  %v810 = vld [vmem:[%s5 + $0x30] sm:$0xff]
  %v811 = vld [vmem:[%s5 + $0x38] sm:$0xff]
  %v812 = vld [vmem:[%s6] sm:$0x1]
  %v814 = vperm.slane %v812, 0
  %v817 = vsel %vm663, %v803, 0
  %819 = vmatpush.msra.mxu0 0.0
  %820 = vmatpush.msra.mxu0 0.0
  %821 = vmatpush.msra.mxu0 0.0
  %822 = vmatpush.msra.mxu0 0.0
  %823 = vmatpush.msra.mxu0 0.0
  %824 = vmatpush.msra.mxu0 0.0
  %825 = vmatpush.msra.mxu0 0.0
  %826 = vmatpush.msra.mxu0 0.0
  %827 = vmatpush.msra.mxu0 %v811
  %828 = vmatpush.msra.mxu0 %v810
  %829 = vmatpush.msra.mxu0 %v809
  %830 = vmatpush.msra.mxu0 %v808
  %831 = vmatpush.msra.mxu0 %v807
  %832 = vmatpush.msra.mxu0 %v806
  %833 = vmatpush.msra.mxu0 %v805
  %834 = vmatpush.msra.mxu0 %v804
  %835 = vmatmul.f32.gmra.mxu0 %v817
  %v836 = vpop.f32.mrf.mxu0
  %v837 = vadd.f32 %v814, %v836
  %838 = vdwg.mxu0
  %v839 = vmax.f32 %v837, 0.0
  %v840 = vld [vmem:[%s7] sm:$0xff]
  %v841 = vld [vmem:[%s7 + $0x8] sm:$0xff]
  %v842 = vld [vmem:[%s7 + $0x10] sm:$0xff]
  %v843 = vld [vmem:[%s7 + $0x18] sm:$0xff]
  %v844 = vld [vmem:[%s8] sm:$0x1]
  %v846 = vperm.slane %v844, 0
  %v849 = vsel %vm801, %v839, 0
  %851 = vmatpush.msra.mxu0 0.0
  %852 = vmatpush.msra.mxu0 0.0
  %853 = vmatpush.msra.mxu0 0.0
  %854 = vmatpush.msra.mxu0 0.0
  %855 = vmatpush.msra.mxu0 0.0
  %856 = vmatpush.msra.mxu0 0.0
  %857 = vmatpush.msra.mxu0 0.0
  %858 = vmatpush.msra.mxu0 0.0
  %859 = vmatpush.msra.mxu0 0.0
  %860 = vmatpush.msra.mxu0 0.0
  %861 = vmatpush.msra.mxu0 0.0
  %862 = vmatpush.msra.mxu0 0.0
  %863 = vmatpush.msra.mxu0 %v843
  %864 = vmatpush.msra.mxu0 %v842
  %865 = vmatpush.msra.mxu0 %v841
  %866 = vmatpush.msra.mxu0 %v840
  %867 = vmatmul.f32.gmra.mxu0 %v849
  %v868 = vpop.f32.mrf.mxu0
  %v869 = vadd.f32 %v846, %v868
  %870 = vdwg.mxu0
  %v871 = vmax.f32 %v869, 0.0
  %v872 = vld [vmem:[%s9] sm:$0xff]
  %v873 = vld [vmem:[%s9 + $0x8] sm:$0xff]
  %v874 = vld [vmem:[%s10] sm:$0x1]
  %v876 = vperm.slane %v874, 0
  %v879 = vsel %vm658, %v871, 0
  %881 = vmatpush.msra.mxu0 0.0
  %882 = vmatpush.msra.mxu0 0.0
  %883 = vmatpush.msra.mxu0 0.0
  %884 = vmatpush.msra.mxu0 0.0
  %885 = vmatpush.msra.mxu0 0.0
  %886 = vmatpush.msra.mxu0 0.0
  %887 = vmatpush.msra.mxu0 0.0
  %888 = vmatpush.msra.mxu0 0.0
  %889 = vmatpush.msra.mxu0 0.0
  %890 = vmatpush.msra.mxu0 0.0
  %891 = vmatpush.msra.mxu0 0.0
  %892 = vmatpush.msra.mxu0 0.0
  %893 = vmatpush.msra.mxu0 0.0
  %894 = vmatpush.msra.mxu0 0.0
  %895 = vmatpush.msra.mxu0 %v873
  %896 = vmatpush.msra.mxu0 %v872
  %897 = vmatmul.f32.gmra.mxu0 %v879
  %v898 = vpop.f32.mrf.mxu0
  %v899 = vadd.f32 %v876, %v898
  %900 = vdwg.mxu0
  %901 = vst [vmem:[%s11] sm:$0xff] %v899
  // Predicated region
  $region46: #{cnn_aaf_forward.1} parent=0 // pred_check
    _
  $region47: #{cnn_aaf_forward.1} parent=0 // pred_check_branch
    %903 = sbr.rel (0) target = $region49
  $region48: #{cnn_aaf_forward.1} parent=0 // pred_region
    _
  $region49: #{cnn_aaf_forward.1} parent=0 // pred_fallthru
    _
  // Predicated region
  $region50: #{cnn_aaf_forward.1} parent=0 // pred_check
    _
  $region51: #{cnn_aaf_forward.1} parent=0 // pred_check_branch
    %905 = sbr.rel (0) target = $region53
  $region52: #{cnn_aaf_forward.1} parent=0 // pred_region
    _
  $region53: #{cnn_aaf_forward.1} parent=0 // pred_fallthru
    _

</llo_original>
